<compile_context>
chip_gen: v5e
topology: v5e:2x2
jax: 0.10.0
libtpu: 0.0.40
codegen_flags: <defaults>
</compile_context>

<pallas_src>
import jax
import jax.numpy as jnp
from jax.experimental import pallas as pl
from jax.experimental.pallas import tpu as pltpu

TASKS = ("segmentation", "depth", "normal")   # NYUv2
ALPHA, BETA = 0.9, 0.1
BN_EPS = 1e-5


def make_nddr_weights(num_tasks, channels, alpha=ALPHA, beta=BETA,
                      dtype=jnp.float32):
    """Per-task 1x1-conv weights exactly as set in NDDRLayer.__init__.

    Returns (T, C, T*C): weights[i] == layer[task_i][0].weight[:, :, 0, 0]
    (beta*I on every C-channel block, alpha*I on block i).
    """
    eye = jnp.eye(channels, dtype=dtype)
    ws = []
    for i in range(num_tasks):
        blocks = [beta * eye for _ in range(num_tasks)]
        blocks[i] = alpha * eye
        ws.append(jnp.concatenate(blocks, axis=1))          # (C, T*C)
    return jnp.stack(ws, axis=0)                             # (T, C, T*C)


def _pick_hw_tile(hw, target=1024):
    """Largest multiple-of-128 divisor of hw up to `target` (else full extent)."""
    if hw % 128 != 0:
        return hw
    best, t, cap = 128, 128, min(hw, target)
    while t <= cap:
        if hw % t == 0:
            best = t
        t += 128
    return best


def _fused_y(x_refs, w_ref, t):
    """y (T*C, hw_tile) = sum_j W_block_j @ x_j, accumulated in f32 on the MXU."""
    y = jnp.dot(w_ref[0], x_refs[0][...], preferred_element_type=jnp.float32)
    for j in range(1, t):
        y += jnp.dot(w_ref[j], x_refs[j][...], preferred_element_type=jnp.float32)
    return y


def _make_stats_kernel(t):
    def kernel(*refs):
        x_refs, w_ref, p_ref = refs[:t], refs[t], refs[t + 1]
        y = _fused_y(x_refs, w_ref, t)
        s = jnp.sum(y, axis=1, keepdims=True)          # (T*C, 1)
        ss = jnp.sum(y * y, axis=1, keepdims=True)     # (T*C, 1)
        p_ref[...] = jnp.concatenate([s, ss], axis=1)  # (T*C, 2)
    return kernel


def _make_norm_kernel(t, c):
    def kernel(*refs):
        x_refs = refs[:t]
        w_ref, mean_ref, inv_ref = refs[t], refs[t + 1], refs[t + 2]
        out_refs = refs[t + 3:]
        y = _fused_y(x_refs, w_ref, t)
        y = (y - mean_ref[...]) * inv_ref[...]
        y = jnp.maximum(y, 0.0)
        for i in range(t):
            out_refs[i][...] = y[i * c:(i + 1) * c, :].astype(out_refs[i].dtype)
    return kernel


def nddr_layer(x_dict, weights, tasks=TASKS):
    """Pallas implementation of NDDRLayer.forward.

    x_dict:  {task: (N, C, H, W)}
    weights: (T, C, T*C) from make_nddr_weights (PyTorch conv weight[:, :, 0, 0])
    returns: {task: (N, C, H, W)}
    """
    t = len(tasks)
    n, c, h, w_sp = x_dict[tasks[0]].shape
    hw = h * w_sp
    m = n * hw

    # Free reshapes only -- no concat, no layout transposes.
    xs = [x_dict[k].reshape(n, c, hw) for k in tasks]

    # Fused weight (rows = all tasks' output channels, task-major), split per
    # *source* task so the kernel never lane-slices: w_split[j] is (T*C, C).
    w_fused = weights.reshape(t * c, t * c)
    w_split = w_fused.reshape(t * c, t, c).transpose(1, 0, 2).astype(xs[0].dtype)

    hw_tile = _pick_hw_tile(hw)
    n_hw = hw // hw_tile
    grid = (n, n_hw)

    x_specs = [pl.BlockSpec((None, c, hw_tile), lambda ni, ji: (ni, 0, ji))
               for _ in range(t)]
    w_spec = pl.BlockSpec((t, t * c, c), lambda ni, ji: (0, 0, 0))
    cparams = pltpu.CompilerParams(dimension_semantics=("parallel", "parallel"))

    # ---- pass 1: per-tile partial sum / sum-of-squares of the fused output ----
    partials = pl.pallas_call(
        _make_stats_kernel(t),
        out_shape=jax.ShapeDtypeStruct((n, n_hw, t * c, 2), jnp.float32),
        grid=grid,
        in_specs=x_specs + [w_spec],
        out_specs=pl.BlockSpec((None, None, t * c, 2),
                               lambda ni, ji: (ni, ji, 0, 0)),
        compiler_params=cparams,
    )(*xs, w_split)

    sums = jnp.sum(partials, axis=(0, 1))                         # (T*C, 2) tiny
    mean = sums[:, 0:1] / m
    var = jnp.maximum(sums[:, 1:2] / m - mean * mean, 0.0)
    inv_std = jax.lax.rsqrt(var + BN_EPS)

    # ---- pass 2: recompute matmul per tile, normalize + ReLU, per-task outs ----
    stat_spec = pl.BlockSpec((t * c, 1), lambda ni, ji: (0, 0))
    out_shapes = tuple(jax.ShapeDtypeStruct((n, c, hw), xs[0].dtype)
                       for _ in range(t))
    out_specs = tuple(pl.BlockSpec((None, c, hw_tile), lambda ni, ji: (ni, 0, ji))
                      for _ in range(t))

    outs = pl.pallas_call(
        _make_norm_kernel(t, c),
        out_shape=out_shapes,
        grid=grid,
        in_specs=x_specs + [w_spec, stat_spec, stat_spec],
        out_specs=out_specs,
        compiler_params=cparams,
    )(*xs, w_split, mean, inv_std)

    return {k: outs[i].reshape(n, c, h, w_sp) for i, k in enumerate(tasks)}


def _nddr_reference(x_dict, tasks=TASKS, alpha=ALPHA, beta=BETA):
    """Pure-JAX reference of NDDRLayer.forward with the __init__ weights."""
    xsum = sum(x_dict[k] for k in tasks)
    out = {}
    for i, k in enumerate(tasks):
        y = beta * xsum + (alpha - beta) * x_dict[k]
        mean = jnp.mean(y, axis=(0, 2, 3), keepdims=True)
        var = jnp.mean(jnp.square(y - mean), axis=(0, 2, 3), keepdims=True)
        out[k] = jnp.maximum((y - mean) * jax.lax.rsqrt(var + BN_EPS), 0.0)
    return out


if __name__ == "__main__":
    # Small shapes consistent with the 'conv' NDDR stage (channels=64),
    # batch=2, spatial=16x16, 3 NYUv2 tasks.
    N, C, H, W = 2, 64, 16, 16
    key = jax.random.PRNGKey(0)
    keys = jax.random.split(key, len(TASKS))
    x = {task: jax.random.normal(k, (N, C, H, W), dtype=jnp.float32)
         for task, k in zip(TASKS, keys)}

    weights = make_nddr_weights(len(TASKS), C)

    out = nddr_layer(x, weights)
    out = jax.tree_util.tree_map(jax.block_until_ready, out)

    ref = _nddr_reference(x)
    for task in TASKS:
        assert out[task].shape == (N, C, H, W)
        err = float(jnp.max(jnp.abs(out[task] - ref[task])))
        assert err < 1e-4, f"{task}: max abs err {err}"

    print("KERNEL_OK")
</pallas_src>

<mosaic_0001>
module attributes {stable_mosaic.version = 11 : i64} {
  func.func @kernel(%arg0: i32, %arg1: i32, %arg2: memref<1x64x256xf32, #tpu.memory_space<vmem>>, %arg3: memref<1x64x256xf32, #tpu.memory_space<vmem>>, %arg4: memref<1x64x256xf32, #tpu.memory_space<vmem>>, %arg5: memref<3x192x64xf32, #tpu.memory_space<vmem>>, %arg6: memref<1x1x192x2xf32, #tpu.memory_space<vmem>>) attributes {dimension_semantics = [#tpu.dimension_semantics<parallel>, #tpu.dimension_semantics<parallel>], iteration_bounds = array<i64: 2, 1>, scalar_prefetch = 0 : i64, scratch_operands = 0 : i64, tpu.core_type = #tpu.core_type<tc>, window_params = [{transform_indices = @transform_0, window_bounds = array<i64: 1, 64, 256>}, {transform_indices = @transform_1, window_bounds = array<i64: 1, 64, 256>}, {transform_indices = @transform_2, window_bounds = array<i64: 1, 64, 256>}, {pipeline_mode = #tpu.pipeline_mode<synchronous>, transform_indices = @transform_3, window_bounds = array<i64: 3, 192, 64>}, {transform_indices = @transform_4, window_bounds = array<i64: 1, 1, 192, 2>}]} {
    %c0 = arith.constant 0 : index
    %c0_0 = arith.constant 0 : index
    %c0_1 = arith.constant 0 : index
    %0 = vector.load %arg5[%c0, %c0_0, %c0_1] : memref<3x192x64xf32, #tpu.memory_space<vmem>>, vector<1x192x64xf32>
    %1 = vector.shape_cast %0 : vector<1x192x64xf32> to vector<192x64xf32>
    %c0_2 = arith.constant 0 : index
    %c0_3 = arith.constant 0 : index
    %c0_4 = arith.constant 0 : index
    %2 = vector.load %arg2[%c0_2, %c0_3, %c0_4] : memref<1x64x256xf32, #tpu.memory_space<vmem>>, vector<1x64x256xf32>
    %3 = vector.shape_cast %2 : vector<1x64x256xf32> to vector<64x256xf32>
    %cst = arith.constant dense<0.000000e+00> : vector<192x256xf32>
    %4 = tpu.matmul %1, %3, %cst {dimension_numbers = #tpu.dot_dimension_numbers<[1], [0], [0], [1], [0, 0, 1, 1], [], []>} : vector<192x64xf32>, vector<64x256xf32>, vector<192x256xf32> -> vector<192x256xf32>
    %c1 = arith.constant 1 : index
    %c0_5 = arith.constant 0 : index
    %c0_6 = arith.constant 0 : index
    %5 = vector.load %arg5[%c1, %c0_5, %c0_6] : memref<3x192x64xf32, #tpu.memory_space<vmem>>, vector<1x192x64xf32>
    %6 = vector.shape_cast %5 : vector<1x192x64xf32> to vector<192x64xf32>
    %c0_7 = arith.constant 0 : index
    %c0_8 = arith.constant 0 : index
    %c0_9 = arith.constant 0 : index
    %7 = vector.load %arg3[%c0_7, %c0_8, %c0_9] : memref<1x64x256xf32, #tpu.memory_space<vmem>>, vector<1x64x256xf32>
    %8 = vector.shape_cast %7 : vector<1x64x256xf32> to vector<64x256xf32>
    %cst_10 = arith.constant dense<0.000000e+00> : vector<192x256xf32>
    %9 = tpu.matmul %6, %8, %cst_10 {dimension_numbers = #tpu.dot_dimension_numbers<[1], [0], [0], [1], [0, 0, 1, 1], [], []>} : vector<192x64xf32>, vector<64x256xf32>, vector<192x256xf32> -> vector<192x256xf32>
    %10 = arith.addf %4, %9 : vector<192x256xf32>
    %c2 = arith.constant 2 : index
    %c0_11 = arith.constant 0 : index
    %c0_12 = arith.constant 0 : index
    %11 = vector.load %arg5[%c2, %c0_11, %c0_12] : memref<3x192x64xf32, #tpu.memory_space<vmem>>, vector<1x192x64xf32>
    %12 = vector.shape_cast %11 : vector<1x192x64xf32> to vector<192x64xf32>
    %c0_13 = arith.constant 0 : index
    %c0_14 = arith.constant 0 : index
    %c0_15 = arith.constant 0 : index
    %13 = vector.load %arg4[%c0_13, %c0_14, %c0_15] : memref<1x64x256xf32, #tpu.memory_space<vmem>>, vector<1x64x256xf32>
    %14 = vector.shape_cast %13 : vector<1x64x256xf32> to vector<64x256xf32>
    %cst_16 = arith.constant dense<0.000000e+00> : vector<192x256xf32>
    %15 = tpu.matmul %12, %14, %cst_16 {dimension_numbers = #tpu.dot_dimension_numbers<[1], [0], [0], [1], [0, 0, 1, 1], [], []>} : vector<192x64xf32>, vector<64x256xf32>, vector<192x256xf32> -> vector<192x256xf32>
    %16 = arith.addf %10, %15 : vector<192x256xf32>
    %cst_17 = arith.constant dense<0.000000e+00> : vector<192xf32>
    %17 = vector.multi_reduction <add>, %16, %cst_17 [1] : vector<192x256xf32> to vector<192xf32>
    %18 = vector.shape_cast %17 : vector<192xf32> to vector<192x1xf32>
    %19 = arith.mulf %16, %16 : vector<192x256xf32>
    %cst_18 = arith.constant dense<0.000000e+00> : vector<192xf32>
    %20 = vector.multi_reduction <add>, %19, %cst_18 [1] : vector<192x256xf32> to vector<192xf32>
    %21 = vector.shape_cast %20 : vector<192xf32> to vector<192x1xf32>
    %22 = tpu.concatenate %18, %21 in 1 : vector<192x1xf32>, vector<192x1xf32> -> vector<192x2xf32>
    %c0_19 = arith.constant 0 : index
    %c0_20 = arith.constant 0 : index
    %c0_21 = arith.constant 0 : index
    %c0_22 = arith.constant 0 : index
    %23 = vector.load %arg6[%c0_19, %c0_20, %c0_21, %c0_22] : memref<1x1x192x2xf32, #tpu.memory_space<vmem>>, vector<1x1x192x2xf32>
    %24 = vector.shape_cast %23 : vector<1x1x192x2xf32> to vector<192x2xf32>
    %25 = vector.shape_cast %22 : vector<192x2xf32> to vector<1x1x192x2xf32>
    tpu.vector_store %arg6[%c0_19, %c0_20, %c0_21, %c0_22], %25 {strides = array<i32>} : memref<1x1x192x2xf32, #tpu.memory_space<vmem>>, vector<1x1x192x2xf32>,
    return
  }
  func.func @transform_0(%arg0: i32, %arg1: i32) -> (i32, i32, i32) {
    %c0_i32 = arith.constant 0 : i32
    %c0_i32_0 = arith.constant 0 : i32
    return %arg0, %c0_i32, %arg1 : i32, i32, i32
  }
  func.func @transform_1(%arg0: i32, %arg1: i32) -> (i32, i32, i32) {
    %c0_i32 = arith.constant 0 : i32
    %c0_i32_0 = arith.constant 0 : i32
    return %arg0, %c0_i32, %arg1 : i32, i32, i32
  }
  func.func @transform_2(%arg0: i32, %arg1: i32) -> (i32, i32, i32) {
    %c0_i32 = arith.constant 0 : i32
    %c0_i32_0 = arith.constant 0 : i32
    return %arg0, %c0_i32, %arg1 : i32, i32, i32
  }
  func.func @transform_3(%arg0: i32, %arg1: i32) -> (i32, i32, i32) {
    %c0_i32 = arith.constant 0 : i32
    %c0_i32_0 = arith.constant 0 : i32
    %c0_i32_1 = arith.constant 0 : i32
    %c0_i32_2 = arith.constant 0 : i32
    return %c0_i32, %c0_i32_0, %c0_i32_1 : i32, i32, i32
  }
  func.func @transform_4(%arg0: i32, %arg1: i32) -> (i32, i32, i32, i32) {
    %c0_i32 = arith.constant 0 : i32
    %c0_i32_0 = arith.constant 0 : i32
    %c0_i32_1 = arith.constant 0 : i32
    return %arg0, %arg1, %c0_i32, %c0_i32_0 : i32, i32, i32, i32
  }
}

</mosaic_0001>

<llo_original>
// kernel: tpu_custom_call.1
$region0: #{tpu_custom_call.1}
  #allocation0 [shape = 'u32[]', space=smem, size = 0x4, offset = 0x4, fixed_abs, tag = 'smem constant byte address 0x4 - core index']
  #allocation1 [shape = 'u32[72,128]{1,0:T(1,128)}', space=vmem, size = 0x9000, scoped, tag = 'internal scratch']
  %s0 = inlined_call_operand.vmem [shape: f32[2,64,256], index: 0, kind: input, shape index: {}]
  %s1 = inlined_call_operand.vmem [shape: f32[2,64,256], index: 1, kind: input, shape index: {}]
  %s2 = inlined_call_operand.vmem [shape: f32[2,64,256], index: 2, kind: input, shape index: {}]
  %s3 = inlined_call_operand.vmem [shape: f32[3,192,64], index: 3, kind: input, shape index: {}]
  %s4 = inlined_call_operand.vmem [shape: f32[2,1,192,2], index: 4, kind: output, shape index: {}]
  %s5 = sld [smem:[#allocation0]]
  $region49: #{tpu_custom_call.1} parent=0
    _
  %s7 = ssub.s32 1, %s5
  %s8 = scalar_select 0, %s7, %s5
  loop: start=0, step=1, limit=4
  $region2: #{tpu_custom_call.1} parent=0 // loop_pre_header
    _
  $region3: #{tpu_custom_call.1} parent=0 // loop_header
    %s10 = sphi 0, %s14
    %p11 = scmp.ge.s32.totalorder %s10, 4
    %s17 = sphi 0, %s29
    %s18 = sphi 0, %s25
    %s19 = sphi 0, %s17
    %s20 = sphi 0, %s18
    %s21 = sphi 0, %s19
    %s22 = sphi 0, %s20
    %s34 = sphi 0, %s36
    %s37 = sphi 0, %s34
    %s38 = sphi 0, %s37
    %s54 = sphi 0, %s38
    %s62 = sphi 0, %s64
    %s65 = sphi 0, %s62
    %s66 = sphi 0, %s65
    %s82 = sphi 0, %s66
    %s90 = sphi 0, %s92
    %s93 = sphi 0, %s90
    %s94 = sphi 0, %s93
    %s110 = sphi 0, %s94
    %s114 = sphi 0, %s114
    %s116 = sphi 0, %s114
    %s117 = sphi 0, %s116
    %s131 = sphi 0, %s117
    %s139 = sphi 0, %s141
    %s142 = sphi 0, %s139
    %s143 = sphi 0, %s142
    %s159 = sphi 0, %s143
  $region4: #{tpu_custom_call.1} parent=0 // loop_header_branch
    %13 = sbr.rel (%p11) target = $region8
  $region5: #{tpu_custom_call.1} parent=0 // loop_body
    %s15 = ssub.s32 %s10, 1
    %s16 = ssub.s32 %s10, 2
    %s23 = sadd.s32 1, %s18
    %p24 = scmp.ge.s32.totalorder %s23, 1
    %s25 = scalar_select %p24, 0, %s23
    %s26 = sadd.s32 1, %s17
    %s27 = scalar_select %p24, %s26, %s17
    %p28 = scmp.ge.s32.totalorder %s27, 2
    %s29 = scalar_select %p28, 0, %s27
    %s30 = ssub.s32 %s17, %s29
    %s31 = ssub.s32 %s18, %s25
    %s32 = sor.u32 %s30, %s31
    %p33 = scmp.eq.s32.totalorder %s32, 0
    %s35 = sadd.s32 %s34, 1
    %s36 = scalar_select %p33, %s34, %s35
    %p39 = pneg %p33
    %p40 = scmp.eq.s32.totalorder %s10, 1
    %p41 = por %p39, %p40
    %p42 = scmp.ne.s32.totalorder %s34, %s37
    %p43 = scmp.eq.s32.totalorder %s10, 0
    %p44 = por %p42, %p43
    %p45 = scmp.ne.s32.totalorder %s34, %s37
    %p46 = scmp.eq.s32.totalorder %s15, 1
    %p47 = por %p45, %p46
    %p48 = scmp.ne.s32.totalorder %s37, %s38
    %p49 = scmp.eq.s32.totalorder %s15, 0
    %p50 = por %p48, %p49
    %p51 = scmp.ne.s32.totalorder %s37, %s38
    %p52 = scmp.eq.s32.totalorder %s16, 1
    %p53 = por %p51, %p52
    %p55 = scmp.ne.s32.totalorder %s38, %s54
    %p56 = scmp.eq.s32.totalorder %s16, 0
    %p57 = por %p55, %p56
    %s58 = ssub.s32 %s17, %s29
    %s59 = ssub.s32 %s18, %s25
    %s60 = sor.u32 %s58, %s59
    %p61 = scmp.eq.s32.totalorder %s60, 0
    %s63 = sadd.s32 %s62, 1
    %s64 = scalar_select %p61, %s62, %s63
    %p67 = pneg %p61
    %p68 = scmp.eq.s32.totalorder %s10, 1
    %p69 = por %p67, %p68
    %p70 = scmp.ne.s32.totalorder %s62, %s65
    %p71 = scmp.eq.s32.totalorder %s10, 0
    %p72 = por %p70, %p71
    %p73 = scmp.ne.s32.totalorder %s62, %s65
    %p74 = scmp.eq.s32.totalorder %s15, 1
    %p75 = por %p73, %p74
    %p76 = scmp.ne.s32.totalorder %s65, %s66
    %p77 = scmp.eq.s32.totalorder %s15, 0
    %p78 = por %p76, %p77
    %p79 = scmp.ne.s32.totalorder %s65, %s66
    %p80 = scmp.eq.s32.totalorder %s16, 1
    %p81 = por %p79, %p80
    %p83 = scmp.ne.s32.totalorder %s66, %s82
    %p84 = scmp.eq.s32.totalorder %s16, 0
    %p85 = por %p83, %p84
    %s86 = ssub.s32 %s17, %s29
    %s87 = ssub.s32 %s18, %s25
    %s88 = sor.u32 %s86, %s87
    %p89 = scmp.eq.s32.totalorder %s88, 0
    %s91 = sadd.s32 %s90, 1
    %s92 = scalar_select %p89, %s90, %s91
    %p95 = pneg %p89
    %p96 = scmp.eq.s32.totalorder %s10, 1
    %p97 = por %p95, %p96
    %p98 = scmp.ne.s32.totalorder %s90, %s93
    %p99 = scmp.eq.s32.totalorder %s10, 0
    %p100 = por %p98, %p99
    %p101 = scmp.ne.s32.totalorder %s90, %s93
    %p102 = scmp.eq.s32.totalorder %s15, 1
    %p103 = por %p101, %p102
    %p104 = scmp.ne.s32.totalorder %s93, %s94
    %p105 = scmp.eq.s32.totalorder %s15, 0
    %p106 = por %p104, %p105
    %p107 = scmp.ne.s32.totalorder %s93, %s94
    %p108 = scmp.eq.s32.totalorder %s16, 1
    %p109 = por %p107, %p108
    %p111 = scmp.ne.s32.totalorder %s94, %s110
    %p112 = scmp.eq.s32.totalorder %s16, 0
    %p113 = por %p111, %p112
    %s115 = sadd.s32 %s114, 1
    %p118 = scmp.eq.s32.totalorder %s10, 1
    %p119 = scmp.ne.s32.totalorder %s114, %s116
    %p120 = scmp.eq.s32.totalorder %s10, 0
    %p121 = por %p119, %p120
    %p122 = scmp.ne.s32.totalorder %s114, %s116
    %p123 = scmp.eq.s32.totalorder %s15, 1
    %p124 = por %p122, %p123
    %p125 = scmp.ne.s32.totalorder %s116, %s117
    %p126 = scmp.eq.s32.totalorder %s15, 0
    %p127 = por %p125, %p126
    %p128 = scmp.ne.s32.totalorder %s116, %s117
    %p129 = scmp.eq.s32.totalorder %s16, 1
    %p130 = por %p128, %p129
    %p132 = scmp.ne.s32.totalorder %s117, %s131
    %p133 = scmp.eq.s32.totalorder %s16, 0
    %p134 = por %p132, %p133
    %s135 = ssub.s32 %s17, %s29
    %s136 = ssub.s32 %s18, %s25
    %s137 = sor.u32 %s135, %s136
    %p138 = scmp.eq.s32.totalorder %s137, 0
    %s140 = sadd.s32 %s139, 1
    %s141 = scalar_select %p138, %s139, %s140
    %p144 = pneg %p138
    %p145 = scmp.eq.s32.totalorder %s10, 1
    %p146 = por %p144, %p145
    %p147 = scmp.ne.s32.totalorder %s139, %s142
    %p148 = scmp.eq.s32.totalorder %s10, 0
    %p149 = por %p147, %p148
    %p150 = scmp.ne.s32.totalorder %s139, %s142
    %p151 = scmp.eq.s32.totalorder %s15, 1
    %p152 = por %p150, %p151
    %p153 = scmp.ne.s32.totalorder %s142, %s143
    %p154 = scmp.eq.s32.totalorder %s15, 0
    %p155 = por %p153, %p154
    %p156 = scmp.ne.s32.totalorder %s142, %s143
    %p157 = scmp.eq.s32.totalorder %s16, 1
    %p158 = por %p156, %p157
    %p160 = scmp.ne.s32.totalorder %s143, %s159
    %p161 = scmp.eq.s32.totalorder %s16, 0
    %p162 = por %p160, %p161
    %p163 = scmp.le.s32.totalorder 1, %s10
    %p164 = scmp.lt.s32.totalorder %s10, 3
    %p165 = pnand %p163, %p164
    %p166 = pneg %p165
    // Predicated region
    $region9: #{tpu_custom_call.1} parent=5 // pred_check
      _
    $region10: #{tpu_custom_call.1} parent=5 // pred_check_branch
      %168 = sbr.rel (%p165) target = $region12
    $region11: #{tpu_custom_call.1} parent=5 // pred_region
      %s169 = ssub.s32 %s10, 1
      // Predicated region
      $region13: #{tpu_custom_call.1} parent=11 // pred_check
        %p170 = pneg %p127
      $region14: #{tpu_custom_call.1} parent=11 // pred_check_branch
        %172 = sbr.rel (%p170) target = $region16
      $region15: #{tpu_custom_call.1} parent=11 // pred_region
        _
      $region16: #{tpu_custom_call.1} parent=11 // pred_fallthru
        _
    $region12: #{tpu_custom_call.1} parent=5 // pred_fallthru
      _
    %p173 = scmp.lt.s32.totalorder %s10, 2
    // Predicated region
    $region17: #{tpu_custom_call.1} parent=5 // pred_check
      %p174 = pneg %p173
    $region18: #{tpu_custom_call.1} parent=5 // pred_check_branch
      %176 = sbr.rel (%p174) target = $region20
    $region19: #{tpu_custom_call.1} parent=5 // pred_region
      // Predicated region
      $region21: #{tpu_custom_call.1} parent=19 // pred_check
        %p177 = pneg %p44
      $region22: #{tpu_custom_call.1} parent=19 // pred_check_branch
        %179 = sbr.rel (%p177) target = $region24
      $region23: #{tpu_custom_call.1} parent=19 // pred_region
        %s180 = smul.u32 2, %s18
        %p181 = scmp.lt.s32.totalorder %s17, 1
        %s182 = scalar_select %p181, %s17, 1
        %p183 = scmp.lt.s32.totalorder %s180, 1
        %s184 = scalar_select %p183, %s180, 1
        %s185 = smul.addr %s182, 16
        %s186 = sadd.s32 %s184, %s185
        %s187 = smul.addr %s186, 8
        %s188 = scalar_lea.vmem %s0, %s187
        %s189 = smul.u32 2, %s18
      $region24: #{tpu_custom_call.1} parent=19 // pred_fallthru
        _
      // Predicated region
      $region25: #{tpu_custom_call.1} parent=19 // pred_check
        %p190 = pneg %p72
      $region26: #{tpu_custom_call.1} parent=19 // pred_check_branch
        %192 = sbr.rel (%p190) target = $region28
      $region27: #{tpu_custom_call.1} parent=19 // pred_region
        %s193 = smul.u32 2, %s18
        %p194 = scmp.lt.s32.totalorder %s17, 1
        %s195 = scalar_select %p194, %s17, 1
        %p196 = scmp.lt.s32.totalorder %s193, 1
        %s197 = scalar_select %p196, %s193, 1
        %s198 = smul.addr %s195, 16
        %s199 = sadd.s32 %s197, %s198
        %s200 = smul.addr %s199, 8
        %s201 = scalar_lea.vmem %s1, %s200
        %s202 = smul.u32 2, %s18
      $region28: #{tpu_custom_call.1} parent=19 // pred_fallthru
        _
      // Predicated region
      $region29: #{tpu_custom_call.1} parent=19 // pred_check
        %p203 = pneg %p100
      $region30: #{tpu_custom_call.1} parent=19 // pred_check_branch
        %205 = sbr.rel (%p203) target = $region32
      $region31: #{tpu_custom_call.1} parent=19 // pred_region
        %s206 = smul.u32 2, %s18
        %p207 = scmp.lt.s32.totalorder %s17, 1
        %s208 = scalar_select %p207, %s17, 1
        %p209 = scmp.lt.s32.totalorder %s206, 1
        %s210 = scalar_select %p209, %s206, 1
        %s211 = smul.addr %s208, 16
        %s212 = sadd.s32 %s210, %s211
        %s213 = smul.addr %s212, 8
        %s214 = scalar_lea.vmem %s2, %s213
        %s215 = smul.u32 2, %s18
      $region32: #{tpu_custom_call.1} parent=19 // pred_fallthru
        _
    $region20: #{tpu_custom_call.1} parent=5 // pred_fallthru
      _
    %p216 = scmp.le.s32.totalorder 1, %s10
    %p217 = scmp.lt.s32.totalorder %s10, 3
    %p218 = pnand %p216, %p217
    %p219 = pneg %p218
    // Predicated region
    $region33: #{tpu_custom_call.1} parent=5 // pred_check
      _
    $region34: #{tpu_custom_call.1} parent=5 // pred_check_branch
      %221 = sbr.rel (%p218) target = $region36
    $region35: #{tpu_custom_call.1} parent=5 // pred_region
      %s222 = ssub.s32 %s10, 1
      %s223 = smul.u32 2, %s20
      %p224 = scmp.lt.s32.totalorder %s19, 1
      %s225 = scalar_select %p224, %s19, 1
      %p226 = scmp.lt.s32.totalorder %s223, 1
      %s227 = scalar_select %p226, %s223, 1
      %s228 = smul.addr %s225, 16
      %s229 = sadd.s32 %s227, %s228
      %s230 = smul.addr %s229, 8
      %s231 = scalar_lea.vmem %s0, %s230
      %p232 = pneg %p50
      %p233 = pneg %p47
      %s234 = smul.u32 2, %s20
      %p235 = scmp.lt.s32.totalorder %s19, 1
      %s236 = scalar_select %p235, %s19, 1
      %p237 = scmp.lt.s32.totalorder %s234, 1
      %s238 = scalar_select %p237, %s234, 1
      %s239 = smul.addr %s236, 16
      %s240 = sadd.s32 %s238, %s239
      %s241 = smul.addr %s240, 8
      %s242 = scalar_lea.vmem %s1, %s241
      %p243 = pneg %p78
      %p244 = pneg %p75
      %s245 = smul.u32 2, %s20
      %p246 = scmp.lt.s32.totalorder %s19, 1
      %s247 = scalar_select %p246, %s19, 1
      %p248 = scmp.lt.s32.totalorder %s245, 1
      %s249 = scalar_select %p248, %s245, 1
      %s250 = smul.addr %s247, 16
      %s251 = sadd.s32 %s249, %s250
      %s252 = smul.addr %s251, 8
      %s253 = scalar_lea.vmem %s2, %s252
      %p254 = pneg %p106
      %p255 = pneg %p103
      %p256 = pneg %p127
      %p257 = pneg %p124
      %p258 = pneg %p155
      %p259 = pneg %p152
      %p260 = scmp.lt.s32.totalorder %s19, 1
      %s261 = scalar_select %p260, %s19, 1
      %p262 = scmp.lt.s32.totalorder %s20, 0
      %s263 = scalar_select %p262, %s20, 0
      %s264 = smul.addr %s263, 24
      %s265 = smul.addr %s261, 24
      %s266 = sadd.s32 %s264, %s265
      %s267 = smul.addr %s266, 8
      %s268 = scalar_lea.vmem %s4, %s267
      %s269 = smul.u32 2, %s20
      %p270 = scmp.lt.s32.totalorder %s19, 1
      %s271 = scalar_select %p270, %s19, 1
      %p272 = scmp.lt.s32.totalorder %s269, 1
      %s273 = scalar_select %p272, %s269, 1
      %s274 = smul.addr %s271, 16
      %s275 = sadd.s32 %s273, %s274
      %s276 = smul.addr %s275, 8
      %s277 = scalar_lea.vmem %s0, %s276
      %s278 = smul.u32 2, %s20
      %s279 = smul.u32 2, %s20
      %p280 = scmp.lt.s32.totalorder %s19, 1
      %s281 = scalar_select %p280, %s19, 1
      %p282 = scmp.lt.s32.totalorder %s279, 1
      %s283 = scalar_select %p282, %s279, 1
      %s284 = smul.addr %s281, 16
      %s285 = sadd.s32 %s283, %s284
      %s286 = smul.addr %s285, 8
      %s287 = scalar_lea.vmem %s1, %s286
      %s288 = smul.u32 2, %s20
      %s289 = smul.u32 2, %s20
      %p290 = scmp.lt.s32.totalorder %s19, 1
      %s291 = scalar_select %p290, %s19, 1
      %p292 = scmp.lt.s32.totalorder %s289, 1
      %s293 = scalar_select %p292, %s289, 1
      %s294 = smul.addr %s291, 16
      %s295 = sadd.s32 %s293, %s294
      %s296 = smul.addr %s295, 8
      %s297 = scalar_lea.vmem %s2, %s296
      %s298 = smul.u32 2, %s20
      %p299 = scmp.lt.s32.totalorder %s19, 1
      %s300 = scalar_select %p299, %s19, 1
      %p301 = scmp.lt.s32.totalorder %s20, 0
      %s302 = scalar_select %p301, %s20, 0
      %s303 = smul.addr %s302, 24
      %s304 = smul.addr %s300, 24
      %s305 = sadd.s32 %s303, %s304
      %s306 = smul.addr %s305, 8
      %s307 = scalar_lea.vmem %s4, %s306
      %v308 = vld [vmem:[%s3] sm:$0xff]
      %v309 = vld [vmem:[%s3 + $0x8] sm:$0xff]
      %v310 = vld [vmem:[%s3 + $0x10] sm:$0xff]
      %v311 = vld [vmem:[%s3 + $0x18] sm:$0xff]
      %v312 = vld [vmem:[%s3 + $0x20] sm:$0xff]
      %v313 = vld [vmem:[%s3 + $0x28] sm:$0xff]
      %v314 = vld [vmem:[%s3 + $0x30] sm:$0xff]
      %v315 = vld [vmem:[%s3 + $0x38] sm:$0xff]
      %v316 = vld [vmem:[%s3 + $0x40] sm:$0xff]
      %v317 = vld [vmem:[%s3 + $0x48] sm:$0xff]
      %v318 = vld [vmem:[%s3 + $0x50] sm:$0xff]
      %v319 = vld [vmem:[%s3 + $0x58] sm:$0xff]
      %v320 = vld [vmem:[%s3 + $0x60] sm:$0xff]
      %v321 = vld [vmem:[%s3 + $0x68] sm:$0xff]
      %v322 = vld [vmem:[%s3 + $0x70] sm:$0xff]
      %v323 = vld [vmem:[%s3 + $0x78] sm:$0xff]
      %v324 = vld [vmem:[%s3 + $0x80] sm:$0xff]
      %v325 = vld [vmem:[%s3 + $0x88] sm:$0xff]
      %v326 = vld [vmem:[%s3 + $0x90] sm:$0xff]
      %v327 = vld [vmem:[%s3 + $0x98] sm:$0xff]
      %v328 = vld [vmem:[%s3 + $0xa0] sm:$0xff]
      %v329 = vld [vmem:[%s3 + $0xa8] sm:$0xff]
      %v330 = vld [vmem:[%s3 + $0xb0] sm:$0xff]
      %v331 = vld [vmem:[%s3 + $0xb8] sm:$0xff]
      %v332 = vld [vmem:[%s277] sm:$0xff]
      %v333 = vld [vmem:[%s277 + $0x8] sm:$0xff]
      %v334 = vld [vmem:[%s277 + $0x10] sm:$0xff]
      %v335 = vld [vmem:[%s277 + $0x18] sm:$0xff]
      %v336 = vld [vmem:[%s277 + $0x20] sm:$0xff]
      %v337 = vld [vmem:[%s277 + $0x28] sm:$0xff]
      %v338 = vld [vmem:[%s277 + $0x30] sm:$0xff]
      %v339 = vld [vmem:[%s277 + $0x38] sm:$0xff]
      %v340 = vld [vmem:[%s277 + $0x40] sm:$0xff]
      %v341 = vld [vmem:[%s277 + $0x48] sm:$0xff]
      %v342 = vld [vmem:[%s277 + $0x50] sm:$0xff]
      %v343 = vld [vmem:[%s277 + $0x58] sm:$0xff]
      %v344 = vld [vmem:[%s277 + $0x60] sm:$0xff]
      %v345 = vld [vmem:[%s277 + $0x68] sm:$0xff]
      %v346 = vld [vmem:[%s277 + $0x70] sm:$0xff]
      %v347 = vld [vmem:[%s277 + $0x78] sm:$0xff]
      %s348 = scalar_lea.vmem %s3, 192
      %v349 = vld [vmem:[%s348] sm:$0xff]
      %v350 = vld [vmem:[%s348 + $0x8] sm:$0xff]
      %v351 = vld [vmem:[%s348 + $0x10] sm:$0xff]
      %v352 = vld [vmem:[%s348 + $0x18] sm:$0xff]
      %v353 = vld [vmem:[%s348 + $0x20] sm:$0xff]
      %v354 = vld [vmem:[%s348 + $0x28] sm:$0xff]
      %v355 = vld [vmem:[%s348 + $0x30] sm:$0xff]
      %v356 = vld [vmem:[%s348 + $0x38] sm:$0xff]
      %v357 = vld [vmem:[%s348 + $0x40] sm:$0xff]
      %v358 = vld [vmem:[%s348 + $0x48] sm:$0xff]
      %v359 = vld [vmem:[%s348 + $0x50] sm:$0xff]
      %v360 = vld [vmem:[%s348 + $0x58] sm:$0xff]
      %v361 = vld [vmem:[%s348 + $0x60] sm:$0xff]
      %v362 = vld [vmem:[%s348 + $0x68] sm:$0xff]
      %v363 = vld [vmem:[%s348 + $0x70] sm:$0xff]
      %v364 = vld [vmem:[%s348 + $0x78] sm:$0xff]
      %v365 = vld [vmem:[%s348 + $0x80] sm:$0xff]
      %v366 = vld [vmem:[%s348 + $0x88] sm:$0xff]
      %v367 = vld [vmem:[%s348 + $0x90] sm:$0xff]
      %v368 = vld [vmem:[%s348 + $0x98] sm:$0xff]
      %v369 = vld [vmem:[%s348 + $0xa0] sm:$0xff]
      %v370 = vld [vmem:[%s348 + $0xa8] sm:$0xff]
      %v371 = vld [vmem:[%s348 + $0xb0] sm:$0xff]
      %v372 = vld [vmem:[%s348 + $0xb8] sm:$0xff]
      %v373 = vld [vmem:[%s287] sm:$0xff]
      %v374 = vld [vmem:[%s287 + $0x8] sm:$0xff]
      %v375 = vld [vmem:[%s287 + $0x10] sm:$0xff]
      %v376 = vld [vmem:[%s287 + $0x18] sm:$0xff]
      %v377 = vld [vmem:[%s287 + $0x20] sm:$0xff]
      %v378 = vld [vmem:[%s287 + $0x28] sm:$0xff]
      %v379 = vld [vmem:[%s287 + $0x30] sm:$0xff]
      %v380 = vld [vmem:[%s287 + $0x38] sm:$0xff]
      %v381 = vld [vmem:[%s287 + $0x40] sm:$0xff]
      %v382 = vld [vmem:[%s287 + $0x48] sm:$0xff]
      %v383 = vld [vmem:[%s287 + $0x50] sm:$0xff]
      %v384 = vld [vmem:[%s287 + $0x58] sm:$0xff]
      %v385 = vld [vmem:[%s287 + $0x60] sm:$0xff]
      %v386 = vld [vmem:[%s287 + $0x68] sm:$0xff]
      %v387 = vld [vmem:[%s287 + $0x70] sm:$0xff]
      %v388 = vld [vmem:[%s287 + $0x78] sm:$0xff]
      %vm389 = vcmask 523264
      %v391 = vsel %vm389, %v349, 0
      %v394 = vsel %vm389, %v350, 0
      %v397 = vsel %vm389, %v351, 0
      %v400 = vsel %vm389, %v352, 0
      %v403 = vsel %vm389, %v353, 0
      %v406 = vsel %vm389, %v354, 0
      %v409 = vsel %vm389, %v355, 0
      %v412 = vsel %vm389, %v356, 0
      %v415 = vsel %vm389, %v357, 0
      %v418 = vsel %vm389, %v358, 0
      %v421 = vsel %vm389, %v359, 0
      %v424 = vsel %vm389, %v360, 0
      %v427 = vsel %vm389, %v361, 0
      %v430 = vsel %vm389, %v362, 0
      %v433 = vsel %vm389, %v363, 0
      %v436 = vsel %vm389, %v364, 0
      %v439 = vsel %vm389, %v365, 0
      %v442 = vsel %vm389, %v366, 0
      %v445 = vsel %vm389, %v367, 0
      %v448 = vsel %vm389, %v368, 0
      %v451 = vsel %vm389, %v369, 0
      %v454 = vsel %vm389, %v370, 0
      %v457 = vsel %vm389, %v371, 0
      %v460 = vsel %vm389, %v372, 0
      %462 = vmatpush.msra.mxu0 0.0
      %463 = vmatpush.msra.mxu0 0.0
      %464 = vmatpush.msra.mxu0 0.0
      %465 = vmatpush.msra.mxu0 0.0
      %466 = vmatpush.msra.mxu0 0.0
      %467 = vmatpush.msra.mxu0 0.0
      %468 = vmatpush.msra.mxu0 0.0
      %469 = vmatpush.msra.mxu0 0.0
      %470 = vmatpush.msra.mxu0 %v387
      %471 = vmatpush.msra.mxu0 %v385
      %472 = vmatpush.msra.mxu0 %v383
      %473 = vmatpush.msra.mxu0 %v381
      %474 = vmatpush.msra.mxu0 %v379
      %475 = vmatpush.msra.mxu0 %v377
      %476 = vmatpush.msra.mxu0 %v375
      %477 = vmatpush.msra.mxu0 %v373
      %478 = vmatmul.f32.gmra.mxu0 %v391
      %v479 = vpop.f32.mrf.mxu0
      %v480 = vadd.f32 0.0, %v479
      %481 = vmatmul.f32.gmra.mxu0 %v394
      %v482 = vpop.f32.mrf.mxu0
      %v483 = vadd.f32 0.0, %v482
      %484 = vmatmul.f32.gmra.mxu0 %v397
      %v485 = vpop.f32.mrf.mxu0
      %v486 = vadd.f32 0.0, %v485
      %487 = vmatmul.f32.gmra.mxu0 %v400
      %v488 = vpop.f32.mrf.mxu0
      %v489 = vadd.f32 0.0, %v488
      %490 = vmatmul.f32.gmra.mxu0 %v403
      %v491 = vpop.f32.mrf.mxu0
      %v492 = vadd.f32 0.0, %v491
      %493 = vmatmul.f32.gmra.mxu0 %v406
      %v494 = vpop.f32.mrf.mxu0
      %v495 = vadd.f32 0.0, %v494
      %496 = vmatmul.f32.gmra.mxu0 %v409
      %v497 = vpop.f32.mrf.mxu0
      %v498 = vadd.f32 0.0, %v497
      %499 = vmatmul.f32.gmra.mxu0 %v412
      %v500 = vpop.f32.mrf.mxu0
      %v501 = vadd.f32 0.0, %v500
      %502 = vmatmul.f32.gmra.mxu0 %v415
      %v503 = vpop.f32.mrf.mxu0
      %v504 = vadd.f32 0.0, %v503
      %505 = vmatmul.f32.gmra.mxu0 %v418
      %v506 = vpop.f32.mrf.mxu0
      %v507 = vadd.f32 0.0, %v506
      %508 = vmatmul.f32.gmra.mxu0 %v421
      %v509 = vpop.f32.mrf.mxu0
      %v510 = vadd.f32 0.0, %v509
      %511 = vmatmul.f32.gmra.mxu0 %v424
      %v512 = vpop.f32.mrf.mxu0
      %v513 = vadd.f32 0.0, %v512
      %514 = vmatmul.f32.gmra.mxu0 %v427
      %v515 = vpop.f32.mrf.mxu0
      %v516 = vadd.f32 0.0, %v515
      %517 = vmatmul.f32.gmra.mxu0 %v430
      %v518 = vpop.f32.mrf.mxu0
      %v519 = vadd.f32 0.0, %v518
      %520 = vmatmul.f32.gmra.mxu0 %v433
      %v521 = vpop.f32.mrf.mxu0
      %v522 = vadd.f32 0.0, %v521
      %523 = vmatmul.f32.gmra.mxu0 %v436
      %v524 = vpop.f32.mrf.mxu0
      %v525 = vadd.f32 0.0, %v524
      %526 = vmatmul.f32.gmra.mxu0 %v439
      %v527 = vpop.f32.mrf.mxu0
      %v528 = vadd.f32 0.0, %v527
      %529 = vmatmul.f32.gmra.mxu0 %v442
      %v530 = vpop.f32.mrf.mxu0
      %v531 = vadd.f32 0.0, %v530
      %532 = vmatmul.f32.gmra.mxu0 %v445
      %v533 = vpop.f32.mrf.mxu0
      %v534 = vadd.f32 0.0, %v533
      %535 = vmatmul.f32.gmra.mxu0 %v448
      %v536 = vpop.f32.mrf.mxu0
      %v537 = vadd.f32 0.0, %v536
      %538 = vmatmul.f32.gmra.mxu0 %v451
      %v539 = vpop.f32.mrf.mxu0
      %v540 = vadd.f32 0.0, %v539
      %541 = vmatmul.f32.gmra.mxu0 %v454
      %v542 = vpop.f32.mrf.mxu0
      %v543 = vadd.f32 0.0, %v542
      %544 = vmatmul.f32.gmra.mxu0 %v457
      %v545 = vpop.f32.mrf.mxu0
      %v546 = vadd.f32 0.0, %v545
      %547 = vmatmul.f32.gmra.mxu0 %v460
      %v548 = vpop.f32.mrf.mxu0
      %v549 = vadd.f32 0.0, %v548
      %550 = vdwg.mxu0
      %551 = vmatpush.msra.mxu0 0.0
      %552 = vmatpush.msra.mxu0 0.0
      %553 = vmatpush.msra.mxu0 0.0
      %554 = vmatpush.msra.mxu0 0.0
      %555 = vmatpush.msra.mxu0 0.0
      %556 = vmatpush.msra.mxu0 0.0
      %557 = vmatpush.msra.mxu0 0.0
      %558 = vmatpush.msra.mxu0 0.0
      %559 = vmatpush.msra.mxu0 %v388
      %560 = vmatpush.msra.mxu0 %v386
      %561 = vmatpush.msra.mxu0 %v384
      %562 = vmatpush.msra.mxu0 %v382
      %563 = vmatpush.msra.mxu0 %v380
      %564 = vmatpush.msra.mxu0 %v378
      %565 = vmatpush.msra.mxu0 %v376
      %566 = vmatpush.msra.mxu0 %v374
      %567 = vmatmul.f32.gmra.mxu0 %v391
      %v568 = vpop.f32.mrf.mxu0
      %v569 = vadd.f32 0.0, %v568
      %570 = vmatmul.f32.gmra.mxu0 %v394
      %v571 = vpop.f32.mrf.mxu0
      %v572 = vadd.f32 0.0, %v571
      %573 = vmatmul.f32.gmra.mxu0 %v397
      %v574 = vpop.f32.mrf.mxu0
      %v575 = vadd.f32 0.0, %v574
      %576 = vmatmul.f32.gmra.mxu0 %v400
      %v577 = vpop.f32.mrf.mxu0
      %v578 = vadd.f32 0.0, %v577
      %579 = vmatmul.f32.gmra.mxu0 %v403
      %v580 = vpop.f32.mrf.mxu0
      %v581 = vadd.f32 0.0, %v580
      %582 = vmatmul.f32.gmra.mxu0 %v406
      %v583 = vpop.f32.mrf.mxu0
      %v584 = vadd.f32 0.0, %v583
      %585 = vmatmul.f32.gmra.mxu0 %v409
      %v586 = vpop.f32.mrf.mxu0
      %v587 = vadd.f32 0.0, %v586
      %588 = vmatmul.f32.gmra.mxu0 %v412
      %v589 = vpop.f32.mrf.mxu0
      %v590 = vadd.f32 0.0, %v589
      %591 = vmatmul.f32.gmra.mxu0 %v415
      %v592 = vpop.f32.mrf.mxu0
      %v593 = vadd.f32 0.0, %v592
      %594 = vmatmul.f32.gmra.mxu0 %v418
      %v595 = vpop.f32.mrf.mxu0
      %v596 = vadd.f32 0.0, %v595
      %597 = vmatmul.f32.gmra.mxu0 %v421
      %v598 = vpop.f32.mrf.mxu0
      %v599 = vadd.f32 0.0, %v598
      %600 = vmatmul.f32.gmra.mxu0 %v424
      %v601 = vpop.f32.mrf.mxu0
      %v602 = vadd.f32 0.0, %v601
      %603 = vmatmul.f32.gmra.mxu0 %v427
      %v604 = vpop.f32.mrf.mxu0
      %v605 = vadd.f32 0.0, %v604
      %606 = vmatmul.f32.gmra.mxu0 %v430
      %v607 = vpop.f32.mrf.mxu0
      %v608 = vadd.f32 0.0, %v607
      %609 = vmatmul.f32.gmra.mxu0 %v433
      %v610 = vpop.f32.mrf.mxu0
      %v611 = vadd.f32 0.0, %v610
      %612 = vmatmul.f32.gmra.mxu0 %v436
      %v613 = vpop.f32.mrf.mxu0
      %v614 = vadd.f32 0.0, %v613
      %615 = vmatmul.f32.gmra.mxu0 %v439
      %v616 = vpop.f32.mrf.mxu0
      %v617 = vadd.f32 0.0, %v616
      %618 = vmatmul.f32.gmra.mxu0 %v442
      %v619 = vpop.f32.mrf.mxu0
      %v620 = vadd.f32 0.0, %v619
      %621 = vmatmul.f32.gmra.mxu0 %v445
      %v622 = vpop.f32.mrf.mxu0
      %v623 = vadd.f32 0.0, %v622
      %624 = vmatmul.f32.gmra.mxu0 %v448
      %v625 = vpop.f32.mrf.mxu0
      %v626 = vadd.f32 0.0, %v625
      %627 = vmatmul.f32.gmra.mxu0 %v451
      %v628 = vpop.f32.mrf.mxu0
      %v629 = vadd.f32 0.0, %v628
      %630 = vmatmul.f32.gmra.mxu0 %v454
      %v631 = vpop.f32.mrf.mxu0
      %v632 = vadd.f32 0.0, %v631
      %633 = vmatmul.f32.gmra.mxu0 %v457
      %v634 = vpop.f32.mrf.mxu0
      %v635 = vadd.f32 0.0, %v634
      %636 = vmatmul.f32.gmra.mxu0 %v460
      %v637 = vpop.f32.mrf.mxu0
      %v638 = vadd.f32 0.0, %v637
      %639 = vdwg.mxu0
      %v641 = vsel %vm389, %v308, 0
      %v644 = vsel %vm389, %v309, 0
      %v647 = vsel %vm389, %v310, 0
      %v650 = vsel %vm389, %v311, 0
      %v653 = vsel %vm389, %v312, 0
      %v656 = vsel %vm389, %v313, 0
      %v659 = vsel %vm389, %v314, 0
      %v662 = vsel %vm389, %v315, 0
      %v665 = vsel %vm389, %v316, 0
      %v668 = vsel %vm389, %v317, 0
      %v671 = vsel %vm389, %v318, 0
      %v674 = vsel %vm389, %v319, 0
      %v677 = vsel %vm389, %v320, 0
      %v680 = vsel %vm389, %v321, 0
      %v683 = vsel %vm389, %v322, 0
      %v686 = vsel %vm389, %v323, 0
      %v689 = vsel %vm389, %v324, 0
      %v692 = vsel %vm389, %v325, 0
      %v695 = vsel %vm389, %v326, 0
      %v698 = vsel %vm389, %v327, 0
      %v701 = vsel %vm389, %v328, 0
      %v704 = vsel %vm389, %v329, 0
      %v707 = vsel %vm389, %v330, 0
      %v710 = vsel %vm389, %v331, 0
      %712 = vmatpush.msra.mxu0 0.0
      %713 = vmatpush.msra.mxu0 0.0
      %714 = vmatpush.msra.mxu0 0.0
      %715 = vmatpush.msra.mxu0 0.0
      %716 = vmatpush.msra.mxu0 0.0
      %717 = vmatpush.msra.mxu0 0.0
      %718 = vmatpush.msra.mxu0 0.0
      %719 = vmatpush.msra.mxu0 0.0
      %720 = vmatpush.msra.mxu0 %v346
      %721 = vmatpush.msra.mxu0 %v344
      %722 = vmatpush.msra.mxu0 %v342
      %723 = vmatpush.msra.mxu0 %v340
      %724 = vmatpush.msra.mxu0 %v338
      %725 = vmatpush.msra.mxu0 %v336
      %726 = vmatpush.msra.mxu0 %v334
      %727 = vmatpush.msra.mxu0 %v332
      %728 = vmatmul.f32.gmra.mxu0 %v641
      %v729 = vpop.f32.mrf.mxu0
      %v730 = vadd.f32 %v480, %v729
      %731 = vmatmul.f32.gmra.mxu0 %v644
      %v732 = vpop.f32.mrf.mxu0
      %v733 = vadd.f32 %v483, %v732
      %734 = vmatmul.f32.gmra.mxu0 %v647
      %v735 = vpop.f32.mrf.mxu0
      %v736 = vadd.f32 %v486, %v735
      %737 = vmatmul.f32.gmra.mxu0 %v650
      %v738 = vpop.f32.mrf.mxu0
      %v739 = vadd.f32 %v489, %v738
      %740 = vmatmul.f32.gmra.mxu0 %v653
      %v741 = vpop.f32.mrf.mxu0
      %v742 = vadd.f32 %v492, %v741
      %743 = vmatmul.f32.gmra.mxu0 %v656
      %v744 = vpop.f32.mrf.mxu0
      %v745 = vadd.f32 %v495, %v744
      %746 = vmatmul.f32.gmra.mxu0 %v659
      %v747 = vpop.f32.mrf.mxu0
      %v748 = vadd.f32 %v498, %v747
      %749 = vmatmul.f32.gmra.mxu0 %v662
      %v750 = vpop.f32.mrf.mxu0
      %v751 = vadd.f32 %v501, %v750
      %752 = vmatmul.f32.gmra.mxu0 %v665
      %v753 = vpop.f32.mrf.mxu0
      %v754 = vadd.f32 %v504, %v753
      %755 = vmatmul.f32.gmra.mxu0 %v668
      %v756 = vpop.f32.mrf.mxu0
      %v757 = vadd.f32 %v507, %v756
      %758 = vmatmul.f32.gmra.mxu0 %v671
      %v759 = vpop.f32.mrf.mxu0
      %v760 = vadd.f32 %v510, %v759
      %761 = vmatmul.f32.gmra.mxu0 %v674
      %v762 = vpop.f32.mrf.mxu0
      %v763 = vadd.f32 %v513, %v762
      %764 = vmatmul.f32.gmra.mxu0 %v677
      %v765 = vpop.f32.mrf.mxu0
      %v766 = vadd.f32 %v516, %v765
      %767 = vmatmul.f32.gmra.mxu0 %v680
      %v768 = vpop.f32.mrf.mxu0
      %v769 = vadd.f32 %v519, %v768
      %770 = vmatmul.f32.gmra.mxu0 %v683
      %v771 = vpop.f32.mrf.mxu0
      %v772 = vadd.f32 %v522, %v771
      %773 = vmatmul.f32.gmra.mxu0 %v686
      %v774 = vpop.f32.mrf.mxu0
      %v775 = vadd.f32 %v525, %v774
      %776 = vmatmul.f32.gmra.mxu0 %v689
      %v777 = vpop.f32.mrf.mxu0
      %v778 = vadd.f32 %v528, %v777
      %779 = vmatmul.f32.gmra.mxu0 %v692
      %v780 = vpop.f32.mrf.mxu0
      %v781 = vadd.f32 %v531, %v780
      %782 = vmatmul.f32.gmra.mxu0 %v695
      %v783 = vpop.f32.mrf.mxu0
      %v784 = vadd.f32 %v534, %v783
      %785 = vmatmul.f32.gmra.mxu0 %v698
      %v786 = vpop.f32.mrf.mxu0
      %v787 = vadd.f32 %v537, %v786
      %788 = vmatmul.f32.gmra.mxu0 %v701
      %v789 = vpop.f32.mrf.mxu0
      %v790 = vadd.f32 %v540, %v789
      %791 = vmatmul.f32.gmra.mxu0 %v704
      %v792 = vpop.f32.mrf.mxu0
      %v793 = vadd.f32 %v543, %v792
      %794 = vmatmul.f32.gmra.mxu0 %v707
      %v795 = vpop.f32.mrf.mxu0
      %v796 = vadd.f32 %v546, %v795
      %797 = vmatmul.f32.gmra.mxu0 %v710
      %v798 = vpop.f32.mrf.mxu0
      %v799 = vadd.f32 %v549, %v798
      %800 = vdwg.mxu0
      %801 = vmatpush.msra.mxu0 0.0
      %802 = vmatpush.msra.mxu0 0.0
      %803 = vmatpush.msra.mxu0 0.0
      %804 = vmatpush.msra.mxu0 0.0
      %805 = vmatpush.msra.mxu0 0.0
      %806 = vmatpush.msra.mxu0 0.0
      %807 = vmatpush.msra.mxu0 0.0
      %808 = vmatpush.msra.mxu0 0.0
      %809 = vmatpush.msra.mxu0 %v347
      %810 = vmatpush.msra.mxu0 %v345
      %811 = vmatpush.msra.mxu0 %v343
      %812 = vmatpush.msra.mxu0 %v341
      %813 = vmatpush.msra.mxu0 %v339
      %814 = vmatpush.msra.mxu0 %v337
      %815 = vmatpush.msra.mxu0 %v335
      %816 = vmatpush.msra.mxu0 %v333
      %817 = vmatmul.f32.gmra.mxu0 %v641
      %v818 = vpop.f32.mrf.mxu0
      %v819 = vadd.f32 %v569, %v818
      %820 = vmatmul.f32.gmra.mxu0 %v644
      %v821 = vpop.f32.mrf.mxu0
      %v822 = vadd.f32 %v572, %v821
      %823 = vmatmul.f32.gmra.mxu0 %v647
      %v824 = vpop.f32.mrf.mxu0
      %v825 = vadd.f32 %v575, %v824
      %826 = vmatmul.f32.gmra.mxu0 %v650
      %v827 = vpop.f32.mrf.mxu0
      %v828 = vadd.f32 %v578, %v827
      %829 = vmatmul.f32.gmra.mxu0 %v653
      %v830 = vpop.f32.mrf.mxu0
      %v831 = vadd.f32 %v581, %v830
      %832 = vmatmul.f32.gmra.mxu0 %v656
      %v833 = vpop.f32.mrf.mxu0
      %v834 = vadd.f32 %v584, %v833
      %835 = vmatmul.f32.gmra.mxu0 %v659
      %v836 = vpop.f32.mrf.mxu0
      %v837 = vadd.f32 %v587, %v836
      %838 = vmatmul.f32.gmra.mxu0 %v662
      %v839 = vpop.f32.mrf.mxu0
      %v840 = vadd.f32 %v590, %v839
      %841 = vmatmul.f32.gmra.mxu0 %v665
      %v842 = vpop.f32.mrf.mxu0
      %v843 = vadd.f32 %v593, %v842
      %844 = vmatmul.f32.gmra.mxu0 %v668
      %v845 = vpop.f32.mrf.mxu0
      %v846 = vadd.f32 %v596, %v845
      %847 = vmatmul.f32.gmra.mxu0 %v671
      %v848 = vpop.f32.mrf.mxu0
      %v849 = vadd.f32 %v599, %v848
      %850 = vmatmul.f32.gmra.mxu0 %v674
      %v851 = vpop.f32.mrf.mxu0
      %v852 = vadd.f32 %v602, %v851
      %853 = vmatmul.f32.gmra.mxu0 %v677
      %v854 = vpop.f32.mrf.mxu0
      %v855 = vadd.f32 %v605, %v854
      %856 = vmatmul.f32.gmra.mxu0 %v680
      %v857 = vpop.f32.mrf.mxu0
      %v858 = vadd.f32 %v608, %v857
      %859 = vmatmul.f32.gmra.mxu0 %v683
      %v860 = vpop.f32.mrf.mxu0
      %v861 = vadd.f32 %v611, %v860
      %862 = vmatmul.f32.gmra.mxu0 %v686
      %v863 = vpop.f32.mrf.mxu0
      %v864 = vadd.f32 %v614, %v863
      %865 = vmatmul.f32.gmra.mxu0 %v689
      %v866 = vpop.f32.mrf.mxu0
      %v867 = vadd.f32 %v617, %v866
      %868 = vmatmul.f32.gmra.mxu0 %v692
      %v869 = vpop.f32.mrf.mxu0
      %v870 = vadd.f32 %v620, %v869
      %871 = vmatmul.f32.gmra.mxu0 %v695
      %v872 = vpop.f32.mrf.mxu0
      %v873 = vadd.f32 %v623, %v872
      %874 = vmatmul.f32.gmra.mxu0 %v698
      %v875 = vpop.f32.mrf.mxu0
      %v876 = vadd.f32 %v626, %v875
      %877 = vmatmul.f32.gmra.mxu0 %v701
      %v878 = vpop.f32.mrf.mxu0
      %v879 = vadd.f32 %v629, %v878
      %880 = vmatmul.f32.gmra.mxu0 %v704
      %v881 = vpop.f32.mrf.mxu0
      %v882 = vadd.f32 %v632, %v881
      %883 = vmatmul.f32.gmra.mxu0 %v707
      %v884 = vpop.f32.mrf.mxu0
      %v885 = vadd.f32 %v635, %v884
      %886 = vmatmul.f32.gmra.mxu0 %v710
      %v887 = vpop.f32.mrf.mxu0
      %v888 = vadd.f32 %v638, %v887
      %889 = vdwg.mxu0
      %s890 = scalar_lea.vmem %s3, 384
      %v891 = vld [vmem:[%s890] sm:$0xff]
      %v892 = vld [vmem:[%s890 + $0x8] sm:$0xff]
      %v893 = vld [vmem:[%s890 + $0x10] sm:$0xff]
      %v894 = vld [vmem:[%s890 + $0x18] sm:$0xff]
      %v895 = vld [vmem:[%s890 + $0x20] sm:$0xff]
      %v896 = vld [vmem:[%s890 + $0x28] sm:$0xff]
      %v897 = vld [vmem:[%s890 + $0x30] sm:$0xff]
      %v898 = vld [vmem:[%s890 + $0x38] sm:$0xff]
      %v899 = vld [vmem:[%s890 + $0x40] sm:$0xff]
      %v900 = vld [vmem:[%s890 + $0x48] sm:$0xff]
      %v901 = vld [vmem:[%s890 + $0x50] sm:$0xff]
      %v902 = vld [vmem:[%s890 + $0x58] sm:$0xff]
      %v903 = vld [vmem:[%s890 + $0x60] sm:$0xff]
      %v904 = vld [vmem:[%s890 + $0x68] sm:$0xff]
      %v905 = vld [vmem:[%s890 + $0x70] sm:$0xff]
      %v906 = vld [vmem:[%s890 + $0x78] sm:$0xff]
      %v907 = vld [vmem:[%s890 + $0x80] sm:$0xff]
      %v908 = vld [vmem:[%s890 + $0x88] sm:$0xff]
      %v909 = vld [vmem:[%s890 + $0x90] sm:$0xff]
      %v910 = vld [vmem:[%s890 + $0x98] sm:$0xff]
      %v911 = vld [vmem:[%s890 + $0xa0] sm:$0xff]
      %v912 = vld [vmem:[%s890 + $0xa8] sm:$0xff]
      %v913 = vld [vmem:[%s890 + $0xb0] sm:$0xff]
      %v914 = vld [vmem:[%s890 + $0xb8] sm:$0xff]
      %v915 = vld [vmem:[%s297] sm:$0xff]
      %v916 = vld [vmem:[%s297 + $0x8] sm:$0xff]
      %v917 = vld [vmem:[%s297 + $0x10] sm:$0xff]
      %v918 = vld [vmem:[%s297 + $0x18] sm:$0xff]
      %v919 = vld [vmem:[%s297 + $0x20] sm:$0xff]
      %v920 = vld [vmem:[%s297 + $0x28] sm:$0xff]
      %v921 = vld [vmem:[%s297 + $0x30] sm:$0xff]
      %v922 = vld [vmem:[%s297 + $0x38] sm:$0xff]
      %v923 = vld [vmem:[%s297 + $0x40] sm:$0xff]
      %v924 = vld [vmem:[%s297 + $0x48] sm:$0xff]
      %v925 = vld [vmem:[%s297 + $0x50] sm:$0xff]
      %v926 = vld [vmem:[%s297 + $0x58] sm:$0xff]
      %v927 = vld [vmem:[%s297 + $0x60] sm:$0xff]
      %v928 = vld [vmem:[%s297 + $0x68] sm:$0xff]
      %v929 = vld [vmem:[%s297 + $0x70] sm:$0xff]
      %v930 = vld [vmem:[%s297 + $0x78] sm:$0xff]
      %v932 = vsel %vm389, %v891, 0
      %v935 = vsel %vm389, %v892, 0
      %v938 = vsel %vm389, %v893, 0
      %v941 = vsel %vm389, %v894, 0
      %v944 = vsel %vm389, %v895, 0
      %v947 = vsel %vm389, %v896, 0
      %v950 = vsel %vm389, %v897, 0
      %v953 = vsel %vm389, %v898, 0
      %v956 = vsel %vm389, %v899, 0
      %v959 = vsel %vm389, %v900, 0
      %v962 = vsel %vm389, %v901, 0
      %v965 = vsel %vm389, %v902, 0
      %v968 = vsel %vm389, %v903, 0
      %v971 = vsel %vm389, %v904, 0
      %v974 = vsel %vm389, %v905, 0
      %v977 = vsel %vm389, %v906, 0
      %v980 = vsel %vm389, %v907, 0
      %v983 = vsel %vm389, %v908, 0
      %v986 = vsel %vm389, %v909, 0
      %v989 = vsel %vm389, %v910, 0
      %v992 = vsel %vm389, %v911, 0
      %v995 = vsel %vm389, %v912, 0
      %v998 = vsel %vm389, %v913, 0
      %v1001 = vsel %vm389, %v914, 0
      %1003 = vmatpush.msra.mxu0 0.0
      %1004 = vmatpush.msra.mxu0 0.0
      %1005 = vmatpush.msra.mxu0 0.0
      %1006 = vmatpush.msra.mxu0 0.0
      %1007 = vmatpush.msra.mxu0 0.0
      %1008 = vmatpush.msra.mxu0 0.0
      %1009 = vmatpush.msra.mxu0 0.0
      %1010 = vmatpush.msra.mxu0 0.0
      %1011 = vmatpush.msra.mxu0 %v929
      %1012 = vmatpush.msra.mxu0 %v927
      %1013 = vmatpush.msra.mxu0 %v925
      %1014 = vmatpush.msra.mxu0 %v923
      %1015 = vmatpush.msra.mxu0 %v921
      %1016 = vmatpush.msra.mxu0 %v919
      %1017 = vmatpush.msra.mxu0 %v917
      %1018 = vmatpush.msra.mxu0 %v915
      %1019 = vmatmul.f32.gmra.mxu0 %v932
      %v1020 = vpop.f32.mrf.mxu0
      %v1021 = vadd.f32 0.0, %v1020
      %1022 = vmatmul.f32.gmra.mxu0 %v935
      %v1023 = vpop.f32.mrf.mxu0
      %v1024 = vadd.f32 0.0, %v1023
      %1025 = vmatmul.f32.gmra.mxu0 %v938
      %v1026 = vpop.f32.mrf.mxu0
      %v1027 = vadd.f32 0.0, %v1026
      %1028 = vmatmul.f32.gmra.mxu0 %v941
      %v1029 = vpop.f32.mrf.mxu0
      %v1030 = vadd.f32 0.0, %v1029
      %1031 = vmatmul.f32.gmra.mxu0 %v944
      %v1032 = vpop.f32.mrf.mxu0
      %v1033 = vadd.f32 0.0, %v1032
      %1034 = vmatmul.f32.gmra.mxu0 %v947
      %v1035 = vpop.f32.mrf.mxu0
      %v1036 = vadd.f32 0.0, %v1035
      %1037 = vmatmul.f32.gmra.mxu0 %v950
      %v1038 = vpop.f32.mrf.mxu0
      %v1039 = vadd.f32 0.0, %v1038
      %1040 = vmatmul.f32.gmra.mxu0 %v953
      %v1041 = vpop.f32.mrf.mxu0
      %v1042 = vadd.f32 0.0, %v1041
      %1043 = vmatmul.f32.gmra.mxu0 %v956
      %v1044 = vpop.f32.mrf.mxu0
      %v1045 = vadd.f32 0.0, %v1044
      %1046 = vmatmul.f32.gmra.mxu0 %v959
      %v1047 = vpop.f32.mrf.mxu0
      %v1048 = vadd.f32 0.0, %v1047
      %1049 = vmatmul.f32.gmra.mxu0 %v962
      %v1050 = vpop.f32.mrf.mxu0
      %v1051 = vadd.f32 0.0, %v1050
      %1052 = vmatmul.f32.gmra.mxu0 %v965
      %v1053 = vpop.f32.mrf.mxu0
      %v1054 = vadd.f32 0.0, %v1053
      %1055 = vmatmul.f32.gmra.mxu0 %v968
      %v1056 = vpop.f32.mrf.mxu0
      %v1057 = vadd.f32 0.0, %v1056
      %1058 = vmatmul.f32.gmra.mxu0 %v971
      %v1059 = vpop.f32.mrf.mxu0
      %v1060 = vadd.f32 0.0, %v1059
      %1061 = vmatmul.f32.gmra.mxu0 %v974
      %v1062 = vpop.f32.mrf.mxu0
      %v1063 = vadd.f32 0.0, %v1062
      %1064 = vmatmul.f32.gmra.mxu0 %v977
      %v1065 = vpop.f32.mrf.mxu0
      %v1066 = vadd.f32 0.0, %v1065
      %1067 = vmatmul.f32.gmra.mxu0 %v980
      %v1068 = vpop.f32.mrf.mxu0
      %v1069 = vadd.f32 0.0, %v1068
      %1070 = vmatmul.f32.gmra.mxu0 %v983
      %v1071 = vpop.f32.mrf.mxu0
      %v1072 = vadd.f32 0.0, %v1071
      %1073 = vmatmul.f32.gmra.mxu0 %v986
      %v1074 = vpop.f32.mrf.mxu0
      %v1075 = vadd.f32 0.0, %v1074
      %1076 = vmatmul.f32.gmra.mxu0 %v989
      %v1077 = vpop.f32.mrf.mxu0
      %v1078 = vadd.f32 0.0, %v1077
      %1079 = vmatmul.f32.gmra.mxu0 %v992
      %v1080 = vpop.f32.mrf.mxu0
      %v1081 = vadd.f32 0.0, %v1080
      %1082 = vmatmul.f32.gmra.mxu0 %v995
      %v1083 = vpop.f32.mrf.mxu0
      %v1084 = vadd.f32 0.0, %v1083
      %1085 = vmatmul.f32.gmra.mxu0 %v998
      %v1086 = vpop.f32.mrf.mxu0
      %v1087 = vadd.f32 0.0, %v1086
      %1088 = vmatmul.f32.gmra.mxu0 %v1001
      %v1089 = vpop.f32.mrf.mxu0
      %v1090 = vadd.f32 0.0, %v1089
      %1091 = vdwg.mxu0
      %1092 = vmatpush.msra.mxu0 0.0
      %1093 = vmatpush.msra.mxu0 0.0
      %1094 = vmatpush.msra.mxu0 0.0
      %1095 = vmatpush.msra.mxu0 0.0
      %1096 = vmatpush.msra.mxu0 0.0
      %1097 = vmatpush.msra.mxu0 0.0
      %1098 = vmatpush.msra.mxu0 0.0
      %1099 = vmatpush.msra.mxu0 0.0
      %1100 = vmatpush.msra.mxu0 %v930
      %1101 = vmatpush.msra.mxu0 %v928
      %1102 = vmatpush.msra.mxu0 %v926
      %1103 = vmatpush.msra.mxu0 %v924
      %1104 = vmatpush.msra.mxu0 %v922
      %1105 = vmatpush.msra.mxu0 %v920
      %1106 = vmatpush.msra.mxu0 %v918
      %1107 = vmatpush.msra.mxu0 %v916
      %1108 = vmatmul.f32.gmra.mxu0 %v932
      %v1109 = vpop.f32.mrf.mxu0
      %v1110 = vadd.f32 0.0, %v1109
      %1111 = vmatmul.f32.gmra.mxu0 %v935
      %v1112 = vpop.f32.mrf.mxu0
      %v1113 = vadd.f32 0.0, %v1112
      %1114 = vmatmul.f32.gmra.mxu0 %v938
      %v1115 = vpop.f32.mrf.mxu0
      %v1116 = vadd.f32 0.0, %v1115
      %1117 = vmatmul.f32.gmra.mxu0 %v941
      %v1118 = vpop.f32.mrf.mxu0
      %v1119 = vadd.f32 0.0, %v1118
      %1120 = vmatmul.f32.gmra.mxu0 %v944
      %v1121 = vpop.f32.mrf.mxu0
      %v1122 = vadd.f32 0.0, %v1121
      %1123 = vmatmul.f32.gmra.mxu0 %v947
      %v1124 = vpop.f32.mrf.mxu0
      %v1125 = vadd.f32 0.0, %v1124
      %1126 = vmatmul.f32.gmra.mxu0 %v950
      %v1127 = vpop.f32.mrf.mxu0
      %v1128 = vadd.f32 0.0, %v1127
      %1129 = vmatmul.f32.gmra.mxu0 %v953
      %v1130 = vpop.f32.mrf.mxu0
      %v1131 = vadd.f32 0.0, %v1130
      %1132 = vmatmul.f32.gmra.mxu0 %v956
      %v1133 = vpop.f32.mrf.mxu0
      %v1134 = vadd.f32 0.0, %v1133
      %1135 = vmatmul.f32.gmra.mxu0 %v959
      %v1136 = vpop.f32.mrf.mxu0
      %v1137 = vadd.f32 0.0, %v1136
      %1138 = vmatmul.f32.gmra.mxu0 %v962
      %v1139 = vpop.f32.mrf.mxu0
      %v1140 = vadd.f32 0.0, %v1139
      %1141 = vmatmul.f32.gmra.mxu0 %v965
      %v1142 = vpop.f32.mrf.mxu0
      %v1143 = vadd.f32 0.0, %v1142
      %1144 = vmatmul.f32.gmra.mxu0 %v968
      %v1145 = vpop.f32.mrf.mxu0
      %v1146 = vadd.f32 0.0, %v1145
      %1147 = vmatmul.f32.gmra.mxu0 %v971
      %v1148 = vpop.f32.mrf.mxu0
      %v1149 = vadd.f32 0.0, %v1148
      %1150 = vmatmul.f32.gmra.mxu0 %v974
      %v1151 = vpop.f32.mrf.mxu0
      %v1152 = vadd.f32 0.0, %v1151
      %1153 = vmatmul.f32.gmra.mxu0 %v977
      %v1154 = vpop.f32.mrf.mxu0
      %v1155 = vadd.f32 0.0, %v1154
      %1156 = vmatmul.f32.gmra.mxu0 %v980
      %v1157 = vpop.f32.mrf.mxu0
      %v1158 = vadd.f32 0.0, %v1157
      %1159 = vmatmul.f32.gmra.mxu0 %v983
      %v1160 = vpop.f32.mrf.mxu0
      %v1161 = vadd.f32 0.0, %v1160
      %1162 = vmatmul.f32.gmra.mxu0 %v986
      %v1163 = vpop.f32.mrf.mxu0
      %v1164 = vadd.f32 0.0, %v1163
      %1165 = vmatmul.f32.gmra.mxu0 %v989
      %v1166 = vpop.f32.mrf.mxu0
      %v1167 = vadd.f32 0.0, %v1166
      %1168 = vmatmul.f32.gmra.mxu0 %v992
      %v1169 = vpop.f32.mrf.mxu0
      %v1170 = vadd.f32 0.0, %v1169
      %1171 = vmatmul.f32.gmra.mxu0 %v995
      %v1172 = vpop.f32.mrf.mxu0
      %v1173 = vadd.f32 0.0, %v1172
      %1174 = vmatmul.f32.gmra.mxu0 %v998
      %v1175 = vpop.f32.mrf.mxu0
      %v1176 = vadd.f32 0.0, %v1175
      %1177 = vmatmul.f32.gmra.mxu0 %v1001
      %v1178 = vpop.f32.mrf.mxu0
      %v1179 = vadd.f32 0.0, %v1178
      %1180 = vdwg.mxu0
      %v1181 = vadd.f32 %v730, %v1021
      %v1182 = vadd.f32 %v819, %v1110
      %v1183 = vadd.f32 %v733, %v1024
      %v1184 = vadd.f32 %v822, %v1113
      %v1185 = vadd.f32 %v736, %v1027
      %v1186 = vadd.f32 %v825, %v1116
      %v1187 = vadd.f32 %v739, %v1030
      %v1188 = vadd.f32 %v828, %v1119
      %v1189 = vadd.f32 %v742, %v1033
      %v1190 = vadd.f32 %v831, %v1122
      %v1191 = vadd.f32 %v745, %v1036
      %v1192 = vadd.f32 %v834, %v1125
      %v1193 = vadd.f32 %v748, %v1039
      %v1194 = vadd.f32 %v837, %v1128
      %v1195 = vadd.f32 %v751, %v1042
      %v1196 = vadd.f32 %v840, %v1131
      %v1197 = vadd.f32 %v754, %v1045
      %v1198 = vadd.f32 %v843, %v1134
      %v1199 = vadd.f32 %v757, %v1048
      %v1200 = vadd.f32 %v846, %v1137
      %v1201 = vadd.f32 %v760, %v1051
      %v1202 = vadd.f32 %v849, %v1140
      %v1203 = vadd.f32 %v763, %v1054
      %v1204 = vadd.f32 %v852, %v1143
      %v1205 = vadd.f32 %v766, %v1057
      %v1206 = vadd.f32 %v855, %v1146
      %v1207 = vadd.f32 %v769, %v1060
      %v1208 = vadd.f32 %v858, %v1149
      %v1209 = vadd.f32 %v772, %v1063
      %v1210 = vadd.f32 %v861, %v1152
      %v1211 = vadd.f32 %v775, %v1066
      %v1212 = vadd.f32 %v864, %v1155
      %v1213 = vadd.f32 %v778, %v1069
      %v1214 = vadd.f32 %v867, %v1158
      %v1215 = vadd.f32 %v781, %v1072
      %v1216 = vadd.f32 %v870, %v1161
      %v1217 = vadd.f32 %v784, %v1075
      %v1218 = vadd.f32 %v873, %v1164
      %v1219 = vadd.f32 %v787, %v1078
      %v1220 = vadd.f32 %v876, %v1167
      %v1221 = vadd.f32 %v790, %v1081
      %v1222 = vadd.f32 %v879, %v1170
      %v1223 = vadd.f32 %v793, %v1084
      %v1224 = vadd.f32 %v882, %v1173
      %v1225 = vadd.f32 %v796, %v1087
      %v1226 = vadd.f32 %v885, %v1176
      %v1227 = vadd.f32 %v799, %v1090
      %v1228 = vadd.f32 %v888, %v1179
      %v1229 = vadd.f32 %v1181, %v1182
      %1230 = vadd.xlane.f32.xlu0 %v1229
      %v1231 = vpop.xlane.xlu0 %1230
      %v1232 = vadd.f32 %v1183, %v1184
      %1233 = vadd.xlane.f32.xlu0 %v1232
      %v1234 = vpop.xlane.xlu0 %1233
      %v1235 = vadd.f32 %v1185, %v1186
      %1236 = vadd.xlane.f32.xlu0 %v1235
      %v1237 = vpop.xlane.xlu0 %1236
      %v1238 = vadd.f32 %v1187, %v1188
      %1239 = vadd.xlane.f32.xlu0 %v1238
      %v1240 = vpop.xlane.xlu0 %1239
      %v1241 = vadd.f32 %v1189, %v1190
      %1242 = vadd.xlane.f32.xlu0 %v1241
      %v1243 = vpop.xlane.xlu0 %1242
      %v1244 = vadd.f32 %v1191, %v1192
      %1245 = vadd.xlane.f32.xlu0 %v1244
      %v1246 = vpop.xlane.xlu0 %1245
      %v1247 = vadd.f32 %v1193, %v1194
      %1248 = vadd.xlane.f32.xlu0 %v1247
      %v1249 = vpop.xlane.xlu0 %1248
      %v1250 = vadd.f32 %v1195, %v1196
      %1251 = vadd.xlane.f32.xlu0 %v1250
      %v1252 = vpop.xlane.xlu0 %1251
      %v1253 = vadd.f32 %v1197, %v1198
      %1254 = vadd.xlane.f32.xlu0 %v1253
      %v1255 = vpop.xlane.xlu0 %1254
      %v1256 = vadd.f32 %v1199, %v1200
      %1257 = vadd.xlane.f32.xlu0 %v1256
      %v1258 = vpop.xlane.xlu0 %1257
      %v1259 = vadd.f32 %v1201, %v1202
      %1260 = vadd.xlane.f32.xlu0 %v1259
      %v1261 = vpop.xlane.xlu0 %1260
      %v1262 = vadd.f32 %v1203, %v1204
      %1263 = vadd.xlane.f32.xlu0 %v1262
      %v1264 = vpop.xlane.xlu0 %1263
      %v1265 = vadd.f32 %v1205, %v1206
      %1266 = vadd.xlane.f32.xlu0 %v1265
      %v1267 = vpop.xlane.xlu0 %1266
      %v1268 = vadd.f32 %v1207, %v1208
      %1269 = vadd.xlane.f32.xlu0 %v1268
      %v1270 = vpop.xlane.xlu0 %1269
      %v1271 = vadd.f32 %v1209, %v1210
      %1272 = vadd.xlane.f32.xlu0 %v1271
      %v1273 = vpop.xlane.xlu0 %1272
      %v1274 = vadd.f32 %v1211, %v1212
      %1275 = vadd.xlane.f32.xlu0 %v1274
      %v1276 = vpop.xlane.xlu0 %1275
      %v1277 = vadd.f32 %v1213, %v1214
      %1278 = vadd.xlane.f32.xlu0 %v1277
      %v1279 = vpop.xlane.xlu0 %1278
      %v1280 = vadd.f32 %v1215, %v1216
      %1281 = vadd.xlane.f32.xlu0 %v1280
      %v1282 = vpop.xlane.xlu0 %1281
      %v1283 = vadd.f32 %v1217, %v1218
      %1284 = vadd.xlane.f32.xlu0 %v1283
      %v1285 = vpop.xlane.xlu0 %1284
      %v1286 = vadd.f32 %v1219, %v1220
      %1287 = vadd.xlane.f32.xlu0 %v1286
      %v1288 = vpop.xlane.xlu0 %1287
      %v1289 = vadd.f32 %v1221, %v1222
      %1290 = vadd.xlane.f32.xlu0 %v1289
      %v1291 = vpop.xlane.xlu0 %1290
      %v1292 = vadd.f32 %v1223, %v1224
      %1293 = vadd.xlane.f32.xlu0 %v1292
      %v1294 = vpop.xlane.xlu0 %1293
      %v1295 = vadd.f32 %v1225, %v1226
      %1296 = vadd.xlane.f32.xlu0 %v1295
      %v1297 = vpop.xlane.xlu0 %1296
      %v1298 = vadd.f32 %v1227, %v1228
      %1299 = vadd.xlane.f32.xlu0 %v1298
      %v1300 = vpop.xlane.xlu0 %1299
      %v1301 = vmul.f32 %v1181, %v1181
      %v1302 = vmul.f32 %v1182, %v1182
      %v1303 = vmul.f32 %v1183, %v1183
      %v1304 = vmul.f32 %v1184, %v1184
      %v1305 = vmul.f32 %v1185, %v1185
      %v1306 = vmul.f32 %v1186, %v1186
      %v1307 = vmul.f32 %v1187, %v1187
      %v1308 = vmul.f32 %v1188, %v1188
      %v1309 = vmul.f32 %v1189, %v1189
      %v1310 = vmul.f32 %v1190, %v1190
      %v1311 = vmul.f32 %v1191, %v1191
      %v1312 = vmul.f32 %v1192, %v1192
      %v1313 = vmul.f32 %v1193, %v1193
      %v1314 = vmul.f32 %v1194, %v1194
      %v1315 = vmul.f32 %v1195, %v1195
      %v1316 = vmul.f32 %v1196, %v1196
      %v1317 = vmul.f32 %v1197, %v1197
      %v1318 = vmul.f32 %v1198, %v1198
      %v1319 = vmul.f32 %v1199, %v1199
      %v1320 = vmul.f32 %v1200, %v1200
      %v1321 = vmul.f32 %v1201, %v1201
      %v1322 = vmul.f32 %v1202, %v1202
      %v1323 = vmul.f32 %v1203, %v1203
      %v1324 = vmul.f32 %v1204, %v1204
      %v1325 = vmul.f32 %v1205, %v1205
      %v1326 = vmul.f32 %v1206, %v1206
      %v1327 = vmul.f32 %v1207, %v1207
      %v1328 = vmul.f32 %v1208, %v1208
      %v1329 = vmul.f32 %v1209, %v1209
      %v1330 = vmul.f32 %v1210, %v1210
      %v1331 = vmul.f32 %v1211, %v1211
      %v1332 = vmul.f32 %v1212, %v1212
      %v1333 = vmul.f32 %v1213, %v1213
      %v1334 = vmul.f32 %v1214, %v1214
      %v1335 = vmul.f32 %v1215, %v1215
      %v1336 = vmul.f32 %v1216, %v1216
      %v1337 = vmul.f32 %v1217, %v1217
      %v1338 = vmul.f32 %v1218, %v1218
      %v1339 = vmul.f32 %v1219, %v1219
      %v1340 = vmul.f32 %v1220, %v1220
      %v1341 = vmul.f32 %v1221, %v1221
      %v1342 = vmul.f32 %v1222, %v1222
      %v1343 = vmul.f32 %v1223, %v1223
      %v1344 = vmul.f32 %v1224, %v1224
      %v1345 = vmul.f32 %v1225, %v1225
      %v1346 = vmul.f32 %v1226, %v1226
      %v1347 = vmul.f32 %v1227, %v1227
      %v1348 = vmul.f32 %v1228, %v1228
      %v1349 = vadd.f32 %v1301, %v1302
      %1350 = vadd.xlane.f32.xlu0 %v1349
      %v1351 = vpop.xlane.xlu0 %1350
      %v1352 = vadd.f32 %v1303, %v1304
      %1353 = vadd.xlane.f32.xlu0 %v1352
      %v1354 = vpop.xlane.xlu0 %1353
      %v1355 = vadd.f32 %v1305, %v1306
      %1356 = vadd.xlane.f32.xlu0 %v1355
      %v1357 = vpop.xlane.xlu0 %1356
      %v1358 = vadd.f32 %v1307, %v1308
      %1359 = vadd.xlane.f32.xlu0 %v1358
      %v1360 = vpop.xlane.xlu0 %1359
      %v1361 = vadd.f32 %v1309, %v1310
      %1362 = vadd.xlane.f32.xlu0 %v1361
      %v1363 = vpop.xlane.xlu0 %1362
      %v1364 = vadd.f32 %v1311, %v1312
      %1365 = vadd.xlane.f32.xlu0 %v1364
      %v1366 = vpop.xlane.xlu0 %1365
      %v1367 = vadd.f32 %v1313, %v1314
      %1368 = vadd.xlane.f32.xlu0 %v1367
      %v1369 = vpop.xlane.xlu0 %1368
      %v1370 = vadd.f32 %v1315, %v1316
      %1371 = vadd.xlane.f32.xlu0 %v1370
      %v1372 = vpop.xlane.xlu0 %1371
      %v1373 = vadd.f32 %v1317, %v1318
      %1374 = vadd.xlane.f32.xlu0 %v1373
      %v1375 = vpop.xlane.xlu0 %1374
      %v1376 = vadd.f32 %v1319, %v1320
      %1377 = vadd.xlane.f32.xlu0 %v1376
      %v1378 = vpop.xlane.xlu0 %1377
      %v1379 = vadd.f32 %v1321, %v1322
      %1380 = vadd.xlane.f32.xlu0 %v1379
      %v1381 = vpop.xlane.xlu0 %1380
      %v1382 = vadd.f32 %v1323, %v1324
      %1383 = vadd.xlane.f32.xlu0 %v1382
      %v1384 = vpop.xlane.xlu0 %1383
      %v1385 = vadd.f32 %v1325, %v1326
      %1386 = vadd.xlane.f32.xlu0 %v1385
      %v1387 = vpop.xlane.xlu0 %1386
      %v1388 = vadd.f32 %v1327, %v1328
      %1389 = vadd.xlane.f32.xlu0 %v1388
      %v1390 = vpop.xlane.xlu0 %1389
      %v1391 = vadd.f32 %v1329, %v1330
      %1392 = vadd.xlane.f32.xlu0 %v1391
      %v1393 = vpop.xlane.xlu0 %1392
      %v1394 = vadd.f32 %v1331, %v1332
      %1395 = vadd.xlane.f32.xlu0 %v1394
      %v1396 = vpop.xlane.xlu0 %1395
      %v1397 = vadd.f32 %v1333, %v1334
      %1398 = vadd.xlane.f32.xlu0 %v1397
      %v1399 = vpop.xlane.xlu0 %1398
      %v1400 = vadd.f32 %v1335, %v1336
      %1401 = vadd.xlane.f32.xlu0 %v1400
      %v1402 = vpop.xlane.xlu0 %1401
      %v1403 = vadd.f32 %v1337, %v1338
      %1404 = vadd.xlane.f32.xlu0 %v1403
      %v1405 = vpop.xlane.xlu0 %1404
      %v1406 = vadd.f32 %v1339, %v1340
      %1407 = vadd.xlane.f32.xlu0 %v1406
      %v1408 = vpop.xlane.xlu0 %1407
      %v1409 = vadd.f32 %v1341, %v1342
      %1410 = vadd.xlane.f32.xlu0 %v1409
      %v1411 = vpop.xlane.xlu0 %1410
      %v1412 = vadd.f32 %v1343, %v1344
      %1413 = vadd.xlane.f32.xlu0 %v1412
      %v1414 = vpop.xlane.xlu0 %1413
      %v1415 = vadd.f32 %v1345, %v1346
      %1416 = vadd.xlane.f32.xlu0 %v1415
      %v1417 = vpop.xlane.xlu0 %1416
      %v1418 = vadd.f32 %v1347, %v1348
      %1419 = vadd.xlane.f32.xlu0 %v1418
      %v1420 = vpop.xlane.xlu0 %1419
      %vm1421 = vcmask 7168
      %v1422 = vsel %vm1421, %v1231, %v1351
      %v1423 = vsel %vm1421, %v1234, %v1354
      %v1424 = vsel %vm1421, %v1237, %v1357
      %v1425 = vsel %vm1421, %v1240, %v1360
      %v1426 = vsel %vm1421, %v1243, %v1363
      %v1427 = vsel %vm1421, %v1246, %v1366
      %v1428 = vsel %vm1421, %v1249, %v1369
      %v1429 = vsel %vm1421, %v1252, %v1372
      %v1430 = vsel %vm1421, %v1255, %v1375
      %v1431 = vsel %vm1421, %v1258, %v1378
      %v1432 = vsel %vm1421, %v1261, %v1381
      %v1433 = vsel %vm1421, %v1264, %v1384
      %v1434 = vsel %vm1421, %v1267, %v1387
      %v1435 = vsel %vm1421, %v1270, %v1390
      %v1436 = vsel %vm1421, %v1273, %v1393
      %v1437 = vsel %vm1421, %v1276, %v1396
      %v1438 = vsel %vm1421, %v1279, %v1399
      %v1439 = vsel %vm1421, %v1282, %v1402
      %v1440 = vsel %vm1421, %v1285, %v1405
      %v1441 = vsel %vm1421, %v1288, %v1408
      %v1442 = vsel %vm1421, %v1291, %v1411
      %v1443 = vsel %vm1421, %v1294, %v1414
      %v1444 = vsel %vm1421, %v1297, %v1417
      %v1445 = vsel %vm1421, %v1300, %v1420
      %vm1446 = vcmask 15360
      %1447 = vst.msk [vmem:[%s307] sm:$0xff] %vm1446, %v1422
      %1448 = vst.msk [vmem:[%s307 + $0x8] sm:$0xff] %vm1446, %v1423
      %1449 = vst.msk [vmem:[%s307 + $0x10] sm:$0xff] %vm1446, %v1424
      %1450 = vst.msk [vmem:[%s307 + $0x18] sm:$0xff] %vm1446, %v1425
      %1451 = vst.msk [vmem:[%s307 + $0x20] sm:$0xff] %vm1446, %v1426
      %1452 = vst.msk [vmem:[%s307 + $0x28] sm:$0xff] %vm1446, %v1427
      %1453 = vst.msk [vmem:[%s307 + $0x30] sm:$0xff] %vm1446, %v1428
      %1454 = vst.msk [vmem:[%s307 + $0x38] sm:$0xff] %vm1446, %v1429
      %1455 = vst.msk [vmem:[%s307 + $0x40] sm:$0xff] %vm1446, %v1430
      %1456 = vst.msk [vmem:[%s307 + $0x48] sm:$0xff] %vm1446, %v1431
      %1457 = vst.msk [vmem:[%s307 + $0x50] sm:$0xff] %vm1446, %v1432
      %1458 = vst.msk [vmem:[%s307 + $0x58] sm:$0xff] %vm1446, %v1433
      %1459 = vst.msk [vmem:[%s307 + $0x60] sm:$0xff] %vm1446, %v1434
      %1460 = vst.msk [vmem:[%s307 + $0x68] sm:$0xff] %vm1446, %v1435
      %1461 = vst.msk [vmem:[%s307 + $0x70] sm:$0xff] %vm1446, %v1436
      %1462 = vst.msk [vmem:[%s307 + $0x78] sm:$0xff] %vm1446, %v1437
      %1463 = vst.msk [vmem:[%s307 + $0x80] sm:$0xff] %vm1446, %v1438
      %1464 = vst.msk [vmem:[%s307 + $0x88] sm:$0xff] %vm1446, %v1439
      %1465 = vst.msk [vmem:[%s307 + $0x90] sm:$0xff] %vm1446, %v1440
      %1466 = vst.msk [vmem:[%s307 + $0x98] sm:$0xff] %vm1446, %v1441
      %1467 = vst.msk [vmem:[%s307 + $0xa0] sm:$0xff] %vm1446, %v1442
      %1468 = vst.msk [vmem:[%s307 + $0xa8] sm:$0xff] %vm1446, %v1443
      %1469 = vst.msk [vmem:[%s307 + $0xb0] sm:$0xff] %vm1446, %v1444
      %1470 = vst.msk [vmem:[%s307 + $0xb8] sm:$0xff] %vm1446, %v1445
      %p1471 = scmp.lt.s32.totalorder %s19, 1
      %s1472 = scalar_select %p1471, %s19, 1
      %p1473 = scmp.lt.s32.totalorder %s20, 0
      %s1474 = scalar_select %p1473, %s20, 0
      %s1475 = smul.addr %s1474, 24
      %s1476 = smul.addr %s1472, 24
      %s1477 = sadd.s32 %s1475, %s1476
      %s1478 = smul.addr %s1477, 8
      %s1479 = scalar_lea.vmem %s4, %s1478
      // Predicated region
      $region37: #{tpu_custom_call.1} parent=35 // pred_check
        %p1480 = pneg %p152
      $region38: #{tpu_custom_call.1} parent=35 // pred_check_branch
        %1482 = sbr.rel (%p1480) target = $region40
      $region39: #{tpu_custom_call.1} parent=35 // pred_region
        _
      $region40: #{tpu_custom_call.1} parent=35 // pred_fallthru
        _
    $region36: #{tpu_custom_call.1} parent=5 // pred_fallthru
      _
    %p1483 = scmp.le.s32.totalorder 2, %s10
    // Predicated region
    $region41: #{tpu_custom_call.1} parent=5 // pred_check
      %p1484 = pneg %p1483
    $region42: #{tpu_custom_call.1} parent=5 // pred_check_branch
      %1486 = sbr.rel (%p1484) target = $region44
    $region43: #{tpu_custom_call.1} parent=5 // pred_region
      %s1487 = ssub.s32 %s10, 2
      // Predicated region
      $region45: #{tpu_custom_call.1} parent=43 // pred_check
        %p1488 = pneg %p158
      $region46: #{tpu_custom_call.1} parent=43 // pred_check_branch
        %1490 = sbr.rel (%p1488) target = $region48
      $region47: #{tpu_custom_call.1} parent=43 // pred_region
        %p1491 = scmp.lt.s32.totalorder %s21, 1
        %s1492 = scalar_select %p1491, %s21, 1
        %p1493 = scmp.lt.s32.totalorder %s22, 0
        %s1494 = scalar_select %p1493, %s22, 0
        %s1495 = smul.addr %s1494, 24
        %s1496 = smul.addr %s1492, 24
        %s1497 = sadd.s32 %s1495, %s1496
        %s1498 = smul.addr %s1497, 8
        %s1499 = scalar_lea.vmem %s4, %s1498
      $region48: #{tpu_custom_call.1} parent=43 // pred_fallthru
        _
    $region44: #{tpu_custom_call.1} parent=5 // pred_fallthru
      _
  $region6: #{tpu_custom_call.1} parent=0 // loop_footer
    %s14 = sadd.s32 1, %s10
  $region7: #{tpu_custom_call.1} parent=0 // loop_footer_branch
    %9 = sbr.rel target = $region3
  $region8: #{tpu_custom_call.1} parent=0 // loop_exit
    _

</llo_original>
